<compile_context>
chip_gen: v5e
topology: v5e:2x2
jax: 0.10.0
libtpu: 0.0.40
codegen_flags: <defaults>
</compile_context>

<pallas_src>
import math
import numpy as np
import jax
import jax.numpy as jnp
from jax import lax
from jax.experimental import pallas as pl
from jax.experimental.pallas import tpu as pltpu

# ----------------------------- STOI constants ------------------------------
FS = 10000             # STOI internal sample rate
N_FRAME = 256          # analysis window length (also DFT K after trimming)
NFFT = 512             # FFT size (frames are zero beyond sample 256)
NBINS_USE = 256        # rfft bins actually needed (all OBM bands < bin 256)
NUMBAND = 15           # third-octave bands
BAND_PAD = 128         # padded band axis
MINFREQ = 150
HOP = N_FRAME // 2     # 128
N_INTEL = 30           # frames per intelligibility segment
BETA = -15.0
CLIP = 10.0 ** (-BETA / 20.0)
EPS = 1e-8


def _vmem_limit(nbytes_estimate):
    # Scoped-VMEM defaults (16 MiB v5e / 32 MiB v6e,v7x) are below physical;
    # size explicitly with headroom, capped at v7x's 64 MiB per-core VMEM.
    return int(min(max(2 * nbytes_estimate + (8 << 20), 32 << 20), 64 << 20))


# ------------------------------ parameter glue ------------------------------
def _thirdoct(fs, nfft, num_bands, min_freq):
    f = np.linspace(0, fs, nfft + 1)[: nfft // 2 + 1]
    k = np.arange(num_bands, dtype=np.float64)
    freq_low = min_freq * 2.0 ** ((2 * k - 1) / 6.0)
    freq_high = min_freq * 2.0 ** ((2 * k + 1) / 6.0)
    obm = np.zeros((num_bands, len(f)), np.float32)
    for i in range(num_bands):
        fl = int(np.argmin((f - freq_low[i]) ** 2))
        fh = int(np.argmin((f - freq_high[i]) ** 2))
        obm[i, fl:fh] = 1.0
    return obm


def _dft_mat_fused():
    # 512-pt DFT evaluated only on the 256 non-zero frame samples, and only on
    # the 256 bins the OBM actually touches; cos in lanes [0:256), sin in
    # [256:512).  Stored in bfloat16 (MXU-native); accumulation stays f32.
    n = np.arange(N_FRAME)[:, None].astype(np.float64)
    k = np.arange(NBINS_USE)[None, :].astype(np.float64)
    ang = 2.0 * np.pi * n * k / NFFT
    m = np.zeros((N_FRAME, 2 * NBINS_USE), np.float32)
    m[:, :NBINS_USE] = np.cos(ang)
    m[:, NBINS_USE:] = np.sin(ang)
    return jnp.asarray(m).astype(jnp.bfloat16)


def _design_resample_filter(up, down, width=6, rolloff=0.99):
    # TODO(synk): windowed-sinc polyphase filter; approximates (not bit-exact
    # with) torchaudio's sinc-interpolation Resample used by torch_stoi.
    half = width * max(up, down)
    n = np.arange(-half, half + 1, dtype=np.float64)
    fc = rolloff * 0.5 * min(1.0 / up, 1.0 / down)
    h = 2.0 * fc * np.sinc(2.0 * fc * n)
    w = 0.5 * (1.0 + np.cos(np.pi * n / half))          # Hann taper
    return jnp.asarray((h * w * up).astype(np.float32))


def _resample(x, up, down, h):
    # x: (R, T) -> (R, ceil(T*up/down))   (plain-JAX glue; it's just a conv)
    T = x.shape[-1]
    out_len = -(-T * up // down)
    L = h.shape[0]
    half = (L - 1) // 2
    t_up = (T - 1) * up + 1
    pad_r = max((out_len - 1) * down + L - half - t_up, 0)
    y = lax.conv_general_dilated(
        x[:, None, :].astype(jnp.float32),
        h[None, None, :],
        window_strides=(down,),
        padding=[(half, pad_r)],
        lhs_dilation=(up,),
        dimension_numbers=("NCH", "OIH", "NCH"),
    )
    return y[:, 0, :out_len]


def _frame_and_window(x, win, n_frames):
    # x: (R, L) -> windowed frames (R, n_frames, N_FRAME) in bfloat16 (matmul
    # LHS only).  No host-side zero padding of the frame axis.
    # TODO(synk): framing could be done in-kernel from the raw 10 kHz signal to
    # halve HBM traffic from the 50% frame overlap.
    idx = np.arange(n_frames)[:, None] * HOP + np.arange(N_FRAME)[None, :]
    frames = x[:, idx].astype(jnp.float32) * win[None, None, :]
    return frames.astype(jnp.bfloat16)


# ------------------------------- SI-SDR kernel -------------------------------
def _make_sisdr_kernel(t_true, chunk, row_blk, lanes_per_chunk):
    """Scale-invariant SDR (zero_mean=True) via one-pass sufficient stats."""
    inv_n = np.float32(1.0 / t_true)
    eps = np.float32(np.finfo(np.float32).eps)
    ten_over_ln10 = np.float32(10.0 / np.log(10.0))

    def kernel(pred_ref, tgt_ref, out_ref, acc_ref):
        k = pl.program_id(1)

        @pl.when(k == 0)
        def _():
            acc_ref[...] = jnp.zeros_like(acc_ref)

        # Mask the (possibly ragged / OOB-padded) tail of the last time chunk.
        col = k * chunk + lax.broadcasted_iota(jnp.int32, (row_blk, chunk), 1)
        valid = col < t_true
        p = jnp.where(valid, pred_ref[...], 0.0)
        t = jnp.where(valid, tgt_ref[...], 0.0)

        # Per-lane partial sums on the VPU; cross-lane reductions only once at
        # the very end (keeps the XLU off the per-chunk critical path).
        sp = jnp.zeros((row_blk, 128), jnp.float32)
        st = jnp.zeros((row_blk, 128), jnp.float32)
        spt = jnp.zeros((row_blk, 128), jnp.float32)
        stt = jnp.zeros((row_blk, 128), jnp.float32)
        spp = jnp.zeros((row_blk, 128), jnp.float32)
        for j in range(lanes_per_chunk):
            ps = p[:, j * 128:(j + 1) * 128]
            ts = t[:, j * 128:(j + 1) * 128]
            sp = sp + ps
            st = st + ts
            spt = spt + ps * ts
            stt = stt + ts * ts
            spp = spp + ps * ps
        acc_ref[0] += sp
        acc_ref[1] += st
        acc_ref[2] += spt
        acc_ref[3] += stt
        acc_ref[4] += spp

        @pl.when(k == pl.num_programs(1) - 1)
        def _():
            sp_ = jnp.sum(acc_ref[0], axis=-1, keepdims=True)
            st_ = jnp.sum(acc_ref[1], axis=-1, keepdims=True)
            spt_ = jnp.sum(acc_ref[2], axis=-1, keepdims=True)
            stt_ = jnp.sum(acc_ref[3], axis=-1, keepdims=True)
            spp_ = jnp.sum(acc_ref[4], axis=-1, keepdims=True)
            # zero-mean corrected second moments (masked columns contribute 0)
            dpt = spt_ - sp_ * st_ * inv_n
            dtt = jnp.maximum(stt_ - st_ * st_ * inv_n, 0.0)
            dpp = jnp.maximum(spp_ - sp_ * sp_ * inv_n, 0.0)
            alpha = (dpt + eps) / (dtt + eps)
            sig = alpha * alpha * dtt
            noise = jnp.maximum(sig - 2.0 * alpha * dpt + dpp, 0.0)
            ratio = (sig + eps) / (noise + eps)
            sisdr = ten_over_ln10 * jnp.log(ratio)        # (row_blk, 1)
            out_ref[...] = jnp.broadcast_to(sisdr, (row_blk, 128))

    return kernel


def sisdr_pallas(pred2d, clean2d):
    R, T = pred2d.shape
    row_blk = 8 if R % 8 == 0 else R          # no host-side row padding
    chunk = min(2048, -(-T // 128) * 128)
    n_chunks = -(-T // chunk)
    lanes_per_chunk = chunk // 128

    vmem_need = (2 * 2 * row_blk * chunk * 4       # 2 inputs, double-buffered
                 + 5 * max(row_blk, 8) * 128 * 4   # stats scratch
                 + 2 * max(row_blk, 8) * 128 * 4)  # output block
    out = pl.pallas_call(
        _make_sisdr_kernel(T, chunk, row_blk, lanes_per_chunk),
        out_shape=jax.ShapeDtypeStruct((R, 128), jnp.float32),
        grid=(R // row_blk, n_chunks),
        in_specs=[pl.BlockSpec((row_blk, chunk), lambda i, k: (i, k)),
                  pl.BlockSpec((row_blk, chunk), lambda i, k: (i, k))],
        out_specs=pl.BlockSpec((row_blk, 128), lambda i, k: (i, 0)),
        scratch_shapes=[pltpu.VMEM((5, row_blk, 128), jnp.float32)],
        compiler_params=pltpu.CompilerParams(
            dimension_semantics=("parallel", "arbitrary"),
            vmem_limit_bytes=_vmem_limit(vmem_need)),
    )(pred2d.astype(jnp.float32), clean2d.astype(jnp.float32))
    return out[:, 0]


# -------------------------------- STOI kernel --------------------------------
def _make_stoi_kernel(n_frames, fpad, num_seg, k_pad):
    one_plus_clip = np.float32(1.0 + CLIP)
    inv_intel = np.float32(1.0 / N_INTEL)
    n_intel_f = np.float32(N_INTEL)
    inv_total = np.float32(1.0 / (NUMBAND * num_seg))

    def kernel(xf_ref, yf_ref, dft_ref, obm_ref, seg_ref, out_ref,
               tob_scratch, rhs_scratch, hoist_scratch):
        # ----- |STFT|^2 and third-octave bands (bf16 MXU, f32 accumulation) --
        def to_tob(fr_bf16):                                    # (fpad, 256)
            spec = jnp.dot(fr_bf16, dft_ref[...],
                           preferred_element_type=jnp.float32)  # (fpad, 512)
            re = spec[:, :NBINS_USE]
            im = spec[:, NBINS_USE:]
            power = re * re + im * im                           # f32
            bands = jnp.dot(power.astype(jnp.bfloat16), obm_ref[...],
                            preferred_element_type=jnp.float32)  # (fpad, 128)
            return jnp.sqrt(jnp.maximum(bands, 0.0))

        x_tob = to_tob(xf_ref[0])        # clean / reference
        y_tob = to_tob(yf_ref[0])        # estimate
        tob_scratch[:, :BAND_PAD] = x_tob
        tob_scratch[:, BAND_PAD:] = y_tob

        # ----- sliding-window RHS = [x | x^2 | y^2] via slice writes ---------
        rhs_scratch[:fpad, :BAND_PAD] = x_tob
        rhs_scratch[:fpad, BAND_PAD:2 * BAND_PAD] = x_tob * x_tob
        rhs_scratch[:fpad, 2 * BAND_PAD:] = y_tob * y_tob
        if k_pad > n_frames:
            # rows >= n_frames come from OOB-padded frame reads -> zero them
            rhs_scratch[n_frames:, :] = jnp.zeros(
                (k_pad - n_frames, 3 * BAND_PAD), jnp.float32)

        # ----- per-segment window sums via one small f32 MXU matmul ----------
        # TODO(synk): for very long clips replace the O(n_frames^2) sliding
        # matrix with a prefix-sum / incremental segment-sum formulation (and
        # tile the frame axis) to stay within v7x's 64 MiB VMEM.
        stats = jnp.dot(seg_ref[...], rhs_scratch[...],
                        preferred_element_type=jnp.float32)  # (num_seg_pad, 384)
        sx = stats[:, :BAND_PAD]
        sx2 = stats[:, BAND_PAD:2 * BAND_PAD]
        sy2 = stats[:, 2 * BAND_PAD:]
        # hoisted per-segment quantities (EUP sqrt/div out of the serial loop)
        scale = jnp.sqrt(sx2 / (sy2 + EPS))
        mx = sx * inv_intel
        varx = jnp.maximum(sx2 - n_intel_f * mx * mx, 0.0)
        hoist_scratch[:, :BAND_PAD] = scale
        hoist_scratch[:, BAND_PAD:2 * BAND_PAD] = mx
        hoist_scratch[:, 2 * BAND_PAD:] = jnp.sqrt(varx)

        # ----- per-segment clip + correlation (unrolled) ---------------------
        def seg_body(m, acc):
            h = hoist_scratch[pl.ds(m, 1), :]                # (1, 384)
            scale_m = h[:, :BAND_PAD]
            mx_m = h[:, BAND_PAD:2 * BAND_PAD]
            sdx_m = h[:, 2 * BAND_PAD:]                      # sqrt(varx)
            xy = tob_scratch[pl.ds(m, N_INTEL), :]           # (30, 256)
            x = xy[:, :BAND_PAD]
            y = xy[:, BAND_PAD:]
            y_prim = jnp.minimum(y * scale_m, x * one_plus_clip)
            s_yp = jnp.sum(y_prim, axis=0, keepdims=True)
            s_yp2 = jnp.sum(y_prim * y_prim, axis=0, keepdims=True)
            s_xyp = jnp.sum(x * y_prim, axis=0, keepdims=True)
            num = s_xyp - mx_m * s_yp
            varyp = jnp.maximum(s_yp2 - s_yp * s_yp * inv_intel, 0.0)
            corr = num / ((sdx_m + EPS) * (jnp.sqrt(varyp) + EPS))
            return acc + corr

        acc0 = jnp.zeros((1, BAND_PAD), jnp.float32)
        if num_seg <= 32:
            acc = acc0
            for m in range(num_seg):                          # static unroll
                acc = seg_body(m, acc)
        else:
            acc = lax.fori_loop(0, num_seg, seg_body, acc0, unroll=8)

        # padded band lanes (>= NUMBAND) contribute exactly 0, so a full-lane
        # sum equals the masked sum.
        neg_stoi = -jnp.sum(acc) * inv_total
        out_ref[...] = jnp.full((1, 1, BAND_PAD), neg_stoi, jnp.float32)

    return kernel


# --------------------------------- module -----------------------------------
class SISDRStoiPallas:
    """JAX/Pallas port of the PyTorch SISDRStoi loss module."""

    def __init__(self, num_chunks, recover_weight=1.0, sample_rate=16000):
        self.num_chunks = num_chunks          # unused in forward (as in PyTorch)
        self.recover_weight = recover_weight
        self.sample_rate = sample_rate
        g = math.gcd(sample_rate, FS)
        self.up, self.down = FS // g, sample_rate // g
        self.resample_filter = _design_resample_filter(self.up, self.down)
        # hann window, torch_stoi convention: np.hanning(win+2)[1:-1]
        self.win = jnp.asarray(np.hanning(N_FRAME + 2)[1:-1].astype(np.float32))
        self.dft_mat = _dft_mat_fused()                        # (256, 512) bf16
        obm_full = _thirdoct(FS, NFFT, NUMBAND, MINFREQ)       # (15, 257)
        assert np.all(obm_full[:, NBINS_USE:] == 0.0), \
            "OBM bands extend past trimmed DFT bins"
        obm_t = np.zeros((NBINS_USE, BAND_PAD), np.float32)
        obm_t[:, :NUMBAND] = obm_full[:, :NBINS_USE].T
        self.obm_t = jnp.asarray(obm_t).astype(jnp.bfloat16)   # (256, 128) bf16
        # TODO(synk): torch_stoi's use_vad=True silent-frame masking is not
        # replicated (no effect for non-silent inputs like this test).

    def _neg_stoi(self, est, target):
        # est, target: (B*S, T) at self.sample_rate -> per-item NegSTOI (B*S,)
        est10 = _resample(est, self.up, self.down, self.resample_filter)
        tgt10 = _resample(target, self.up, self.down, self.resample_filter)
        L = est10.shape[-1]
        n_frames = (L - N_FRAME) // HOP + 1
        assert n_frames >= N_INTEL, "signal too short for STOI"
        num_seg = n_frames - N_INTEL + 1
        fpad = -(-n_frames // 8) * 8
        num_seg_pad = -(-num_seg // 8) * 8
        k_pad = -(-fpad // 128) * 128

        xf = _frame_and_window(tgt10, self.win, n_frames)   # clean  (BS,nf,256)
        yf = _frame_and_window(est10, self.win, n_frames)   # estimate

        # static 0/1 sliding-window matrix (kept f32: the windowed variances
        # would suffer bf16 cancellation).
        seg_np = np.zeros((num_seg_pad, k_pad), np.float32)
        for m in range(num_seg):
            seg_np[m, m:m + N_INTEL] = 1.0
        seg = jnp.asarray(seg_np)

        BS = xf.shape[0]
        vmem_need = (
            2 * 2 * fpad * N_FRAME * 2              # xf/yf blocks (bf16, x2 buf)
            + 2 * N_FRAME * 2 * NBINS_USE * 2       # dft weight
            + 2 * NBINS_USE * BAND_PAD * 2          # obm weight
            + 2 * num_seg_pad * k_pad * 4           # seg matrix
            + fpad * 2 * BAND_PAD * 4               # tob scratch
            + k_pad * 3 * BAND_PAD * 4              # rhs scratch
            + num_seg_pad * 3 * BAND_PAD * 4        # hoist scratch
            + 4 * fpad * 2 * NBINS_USE * 4          # matmul intermediates
        )
        # TODO(synk): mark the constant-weight inputs (dft/obm/seg) with
        # pipeline_mode=pl.Buffered(1) (single buffering) once that BlockSpec
        # option is confirmed available on the deployment JAX version; also
        # batch several items per grid step when fpad is small (MXU fill).
        out = pl.pallas_call(
            _make_stoi_kernel(n_frames, fpad, num_seg, k_pad),
            out_shape=jax.ShapeDtypeStruct((BS, 1, BAND_PAD), jnp.float32),
            grid=(BS,),
            in_specs=[
                pl.BlockSpec((1, fpad, N_FRAME), lambda b: (b, 0, 0)),
                pl.BlockSpec((1, fpad, N_FRAME), lambda b: (b, 0, 0)),
                pl.BlockSpec((N_FRAME, 2 * NBINS_USE), lambda b: (0, 0)),
                pl.BlockSpec((NBINS_USE, BAND_PAD), lambda b: (0, 0)),
                pl.BlockSpec((num_seg_pad, k_pad), lambda b: (0, 0)),
            ],
            out_specs=pl.BlockSpec((1, 1, BAND_PAD), lambda b: (b, 0, 0)),
            scratch_shapes=[
                pltpu.VMEM((fpad, 2 * BAND_PAD), jnp.float32),
                pltpu.VMEM((k_pad, 3 * BAND_PAD), jnp.float32),
                pltpu.VMEM((num_seg_pad, 3 * BAND_PAD), jnp.float32),
            ],
            compiler_params=pltpu.CompilerParams(
                dimension_semantics=("parallel",),
                vmem_limit_bytes=_vmem_limit(vmem_need)),
        )(xf, yf, self.dft_mat, self.obm_t, seg)
        return out[:, 0, 0]                                    # (B*S,)

    def __call__(self, predict_audio, clean_audio):
        """predict_audio, clean_audio: (batch, source, time) float32."""
        B, S, T = predict_audio.shape
        pred2d = predict_audio.reshape(B * S, T)
        clean2d = clean_audio.reshape(B * S, T)

        si_sdr = sisdr_pallas(pred2d, clean2d)
        loss_t = -jnp.mean(si_sdr)
        if self.recover_weight == 0:
            return {'main': loss_t, 'si_sdr': loss_t,
                    'stoi': jnp.asarray(0.0, jnp.float32)}
        # sum_i mean_b(negstoi)/S  ==  mean over all (batch, source) items
        stoi_loss = jnp.mean(self._neg_stoi(pred2d, clean2d))
        return {'main': loss_t + self.recover_weight * stoi_loss,
                'si_sdr': loss_t, 'stoi': stoi_loss}


if __name__ == "__main__":
    key = jax.random.PRNGKey(0)
    B, S, T = 2, 1, 8192                       # (batch, source=1, time)
    k1, k2 = jax.random.split(key)
    clean = jax.random.normal(k1, (B, S, T), jnp.float32)
    noise = jax.random.normal(k2, (B, S, T), jnp.float32)
    pred = clean + 0.3 * noise

    loss_mod = SISDRStoiPallas(num_chunks=4, recover_weight=1.0)
    out = loss_mod(pred, clean)
    jax.block_until_ready(out['main'])
    for name in ('main', 'si_sdr', 'stoi'):
        assert bool(jnp.isfinite(out[name])), f"non-finite loss: {name}"
    print("KERNEL_OK")
</pallas_src>

<mosaic_0001>
module attributes {stable_mosaic.version = 11 : i64} {
  func.func @kernel(%arg0: i32, %arg1: i32, %arg2: memref<2x2048xf32, #tpu.memory_space<vmem>>, %arg3: memref<2x2048xf32, #tpu.memory_space<vmem>>, %arg4: memref<2x128xf32, #tpu.memory_space<vmem>>, %arg5: memref<5x2x128xf32, #tpu.memory_space<vmem>>) attributes {dimension_semantics = [#tpu.dimension_semantics<parallel>, #tpu.dimension_semantics<arbitrary>], iteration_bounds = array<i64: 1, 4>, scalar_prefetch = 0 : i64, scratch_operands = 1 : i64, tpu.core_type = #tpu.core_type<tc>, window_params = [{transform_indices = @transform_0, window_bounds = array<i64: 2, 2048>}, {transform_indices = @transform_1, window_bounds = array<i64: 2, 2048>}, {transform_indices = @transform_2, window_bounds = array<i64: 2, 128>}]} {
    %c0_i32 = arith.constant 0 : i32
    %0 = arith.cmpi eq, %arg1, %c0_i32 : i32
    %1 = arith.extui %0 : i1 to i32
    %c0_i32_0 = arith.constant 0 : i32
    %2 = arith.cmpi ne, %1, %c0_i32_0 : i32
    scf.if %2 {
      %cst_37 = arith.constant 0.000000e+00 : f32
      %213 = vector.broadcast %cst_37 : f32 to vector<5x2x128xf32>
      %c0_38 = arith.constant 0 : index
      %c0_39 = arith.constant 0 : index
      %c0_40 = arith.constant 0 : index
      %214 = vector.load %arg5[%c0_38, %c0_39, %c0_40] : memref<5x2x128xf32, #tpu.memory_space<vmem>>, vector<5x2x128xf32>
      tpu.vector_store %arg5[%c0_38, %c0_39, %c0_40], %213 {strides = array<i32>} : memref<5x2x128xf32, #tpu.memory_space<vmem>>, vector<5x2x128xf32>,
    } else {
    }
    %c2048_i32 = arith.constant 2048 : i32
    %3 = arith.muli %arg1, %c2048_i32 : i32
    %4 = tpu.iota {dimensions = array<i32: 1>} : vector<2x2048xi32>
    %5 = vector.broadcast %3 : i32 to vector<2x2048xi32>
    %6 = arith.addi %5, %4 : vector<2x2048xi32>
    %c8192_i32 = arith.constant 8192 : i32
    %7 = vector.broadcast %c8192_i32 : i32 to vector<2x2048xi32>
    %8 = arith.cmpi slt, %6, %7 : vector<2x2048xi32>
    %c0 = arith.constant 0 : index
    %c0_1 = arith.constant 0 : index
    %9 = vector.load %arg2[%c0, %c0_1] : memref<2x2048xf32, #tpu.memory_space<vmem>>, vector<2x2048xf32>
    %cst = arith.constant 0.000000e+00 : f32
    %10 = vector.broadcast %cst : f32 to vector<2x2048xf32>
    %11 = arith.select %8, %9, %10 : vector<2x2048xi1>, vector<2x2048xf32>
    %c0_2 = arith.constant 0 : index
    %c0_3 = arith.constant 0 : index
    %12 = vector.load %arg3[%c0_2, %c0_3] : memref<2x2048xf32, #tpu.memory_space<vmem>>, vector<2x2048xf32>
    %cst_4 = arith.constant 0.000000e+00 : f32
    %13 = vector.broadcast %cst_4 : f32 to vector<2x2048xf32>
    %14 = arith.select %8, %12, %13 : vector<2x2048xi1>, vector<2x2048xf32>
    %cst_5 = arith.constant 0.000000e+00 : f32
    %15 = vector.broadcast %cst_5 : f32 to vector<2x128xf32>
    %cst_6 = arith.constant 0.000000e+00 : f32
    %16 = vector.broadcast %cst_6 : f32 to vector<2x128xf32>
    %cst_7 = arith.constant 0.000000e+00 : f32
    %17 = vector.broadcast %cst_7 : f32 to vector<2x128xf32>
    %cst_8 = arith.constant 0.000000e+00 : f32
    %18 = vector.broadcast %cst_8 : f32 to vector<2x128xf32>
    %cst_9 = arith.constant 0.000000e+00 : f32
    %19 = vector.broadcast %cst_9 : f32 to vector<2x128xf32>
    %20 = vector.extract_strided_slice %11 {offsets = [0, 0], sizes = [2, 128], strides = [1, 1]} : vector<2x2048xf32> to vector<2x128xf32>
    %21 = vector.extract_strided_slice %14 {offsets = [0, 0], sizes = [2, 128], strides = [1, 1]} : vector<2x2048xf32> to vector<2x128xf32>
    %22 = arith.addf %15, %20 : vector<2x128xf32>
    %23 = arith.addf %16, %21 : vector<2x128xf32>
    %24 = arith.mulf %20, %21 : vector<2x128xf32>
    %25 = arith.addf %17, %24 : vector<2x128xf32>
    %26 = arith.mulf %21, %21 : vector<2x128xf32>
    %27 = arith.addf %18, %26 : vector<2x128xf32>
    %28 = arith.mulf %20, %20 : vector<2x128xf32>
    %29 = arith.addf %19, %28 : vector<2x128xf32>
    %30 = vector.extract_strided_slice %11 {offsets = [0, 128], sizes = [2, 128], strides = [1, 1]} : vector<2x2048xf32> to vector<2x128xf32>
    %31 = vector.extract_strided_slice %14 {offsets = [0, 128], sizes = [2, 128], strides = [1, 1]} : vector<2x2048xf32> to vector<2x128xf32>
    %32 = arith.addf %22, %30 : vector<2x128xf32>
    %33 = arith.addf %23, %31 : vector<2x128xf32>
    %34 = arith.mulf %30, %31 : vector<2x128xf32>
    %35 = arith.addf %25, %34 : vector<2x128xf32>
    %36 = arith.mulf %31, %31 : vector<2x128xf32>
    %37 = arith.addf %27, %36 : vector<2x128xf32>
    %38 = arith.mulf %30, %30 : vector<2x128xf32>
    %39 = arith.addf %29, %38 : vector<2x128xf32>
    %40 = vector.extract_strided_slice %11 {offsets = [0, 256], sizes = [2, 128], strides = [1, 1]} : vector<2x2048xf32> to vector<2x128xf32>
    %41 = vector.extract_strided_slice %14 {offsets = [0, 256], sizes = [2, 128], strides = [1, 1]} : vector<2x2048xf32> to vector<2x128xf32>
    %42 = arith.addf %32, %40 : vector<2x128xf32>
    %43 = arith.addf %33, %41 : vector<2x128xf32>
    %44 = arith.mulf %40, %41 : vector<2x128xf32>
    %45 = arith.addf %35, %44 : vector<2x128xf32>
    %46 = arith.mulf %41, %41 : vector<2x128xf32>
    %47 = arith.addf %37, %46 : vector<2x128xf32>
    %48 = arith.mulf %40, %40 : vector<2x128xf32>
    %49 = arith.addf %39, %48 : vector<2x128xf32>
    %50 = vector.extract_strided_slice %11 {offsets = [0, 384], sizes = [2, 128], strides = [1, 1]} : vector<2x2048xf32> to vector<2x128xf32>
    %51 = vector.extract_strided_slice %14 {offsets = [0, 384], sizes = [2, 128], strides = [1, 1]} : vector<2x2048xf32> to vector<2x128xf32>
    %52 = arith.addf %42, %50 : vector<2x128xf32>
    %53 = arith.addf %43, %51 : vector<2x128xf32>
    %54 = arith.mulf %50, %51 : vector<2x128xf32>
    %55 = arith.addf %45, %54 : vector<2x128xf32>
    %56 = arith.mulf %51, %51 : vector<2x128xf32>
    %57 = arith.addf %47, %56 : vector<2x128xf32>
    %58 = arith.mulf %50, %50 : vector<2x128xf32>
    %59 = arith.addf %49, %58 : vector<2x128xf32>
    %60 = vector.extract_strided_slice %11 {offsets = [0, 512], sizes = [2, 128], strides = [1, 1]} : vector<2x2048xf32> to vector<2x128xf32>
    %61 = vector.extract_strided_slice %14 {offsets = [0, 512], sizes = [2, 128], strides = [1, 1]} : vector<2x2048xf32> to vector<2x128xf32>
    %62 = arith.addf %52, %60 : vector<2x128xf32>
    %63 = arith.addf %53, %61 : vector<2x128xf32>
    %64 = arith.mulf %60, %61 : vector<2x128xf32>
    %65 = arith.addf %55, %64 : vector<2x128xf32>
    %66 = arith.mulf %61, %61 : vector<2x128xf32>
    %67 = arith.addf %57, %66 : vector<2x128xf32>
    %68 = arith.mulf %60, %60 : vector<2x128xf32>
    %69 = arith.addf %59, %68 : vector<2x128xf32>
    %70 = vector.extract_strided_slice %11 {offsets = [0, 640], sizes = [2, 128], strides = [1, 1]} : vector<2x2048xf32> to vector<2x128xf32>
    %71 = vector.extract_strided_slice %14 {offsets = [0, 640], sizes = [2, 128], strides = [1, 1]} : vector<2x2048xf32> to vector<2x128xf32>
    %72 = arith.addf %62, %70 : vector<2x128xf32>
    %73 = arith.addf %63, %71 : vector<2x128xf32>
    %74 = arith.mulf %70, %71 : vector<2x128xf32>
    %75 = arith.addf %65, %74 : vector<2x128xf32>
    %76 = arith.mulf %71, %71 : vector<2x128xf32>
    %77 = arith.addf %67, %76 : vector<2x128xf32>
    %78 = arith.mulf %70, %70 : vector<2x128xf32>
    %79 = arith.addf %69, %78 : vector<2x128xf32>
    %80 = vector.extract_strided_slice %11 {offsets = [0, 768], sizes = [2, 128], strides = [1, 1]} : vector<2x2048xf32> to vector<2x128xf32>
    %81 = vector.extract_strided_slice %14 {offsets = [0, 768], sizes = [2, 128], strides = [1, 1]} : vector<2x2048xf32> to vector<2x128xf32>
    %82 = arith.addf %72, %80 : vector<2x128xf32>
    %83 = arith.addf %73, %81 : vector<2x128xf32>
    %84 = arith.mulf %80, %81 : vector<2x128xf32>
    %85 = arith.addf %75, %84 : vector<2x128xf32>
    %86 = arith.mulf %81, %81 : vector<2x128xf32>
    %87 = arith.addf %77, %86 : vector<2x128xf32>
    %88 = arith.mulf %80, %80 : vector<2x128xf32>
    %89 = arith.addf %79, %88 : vector<2x128xf32>
    %90 = vector.extract_strided_slice %11 {offsets = [0, 896], sizes = [2, 128], strides = [1, 1]} : vector<2x2048xf32> to vector<2x128xf32>
    %91 = vector.extract_strided_slice %14 {offsets = [0, 896], sizes = [2, 128], strides = [1, 1]} : vector<2x2048xf32> to vector<2x128xf32>
    %92 = arith.addf %82, %90 : vector<2x128xf32>
    %93 = arith.addf %83, %91 : vector<2x128xf32>
    %94 = arith.mulf %90, %91 : vector<2x128xf32>
    %95 = arith.addf %85, %94 : vector<2x128xf32>
    %96 = arith.mulf %91, %91 : vector<2x128xf32>
    %97 = arith.addf %87, %96 : vector<2x128xf32>
    %98 = arith.mulf %90, %90 : vector<2x128xf32>
    %99 = arith.addf %89, %98 : vector<2x128xf32>
    %100 = vector.extract_strided_slice %11 {offsets = [0, 1024], sizes = [2, 128], strides = [1, 1]} : vector<2x2048xf32> to vector<2x128xf32>
    %101 = vector.extract_strided_slice %14 {offsets = [0, 1024], sizes = [2, 128], strides = [1, 1]} : vector<2x2048xf32> to vector<2x128xf32>
    %102 = arith.addf %92, %100 : vector<2x128xf32>
    %103 = arith.addf %93, %101 : vector<2x128xf32>
    %104 = arith.mulf %100, %101 : vector<2x128xf32>
    %105 = arith.addf %95, %104 : vector<2x128xf32>
    %106 = arith.mulf %101, %101 : vector<2x128xf32>
    %107 = arith.addf %97, %106 : vector<2x128xf32>
    %108 = arith.mulf %100, %100 : vector<2x128xf32>
    %109 = arith.addf %99, %108 : vector<2x128xf32>
    %110 = vector.extract_strided_slice %11 {offsets = [0, 1152], sizes = [2, 128], strides = [1, 1]} : vector<2x2048xf32> to vector<2x128xf32>
    %111 = vector.extract_strided_slice %14 {offsets = [0, 1152], sizes = [2, 128], strides = [1, 1]} : vector<2x2048xf32> to vector<2x128xf32>
    %112 = arith.addf %102, %110 : vector<2x128xf32>
    %113 = arith.addf %103, %111 : vector<2x128xf32>
    %114 = arith.mulf %110, %111 : vector<2x128xf32>
    %115 = arith.addf %105, %114 : vector<2x128xf32>
    %116 = arith.mulf %111, %111 : vector<2x128xf32>
    %117 = arith.addf %107, %116 : vector<2x128xf32>
    %118 = arith.mulf %110, %110 : vector<2x128xf32>
    %119 = arith.addf %109, %118 : vector<2x128xf32>
    %120 = vector.extract_strided_slice %11 {offsets = [0, 1280], sizes = [2, 128], strides = [1, 1]} : vector<2x2048xf32> to vector<2x128xf32>
    %121 = vector.extract_strided_slice %14 {offsets = [0, 1280], sizes = [2, 128], strides = [1, 1]} : vector<2x2048xf32> to vector<2x128xf32>
    %122 = arith.addf %112, %120 : vector<2x128xf32>
    %123 = arith.addf %113, %121 : vector<2x128xf32>
    %124 = arith.mulf %120, %121 : vector<2x128xf32>
    %125 = arith.addf %115, %124 : vector<2x128xf32>
    %126 = arith.mulf %121, %121 : vector<2x128xf32>
    %127 = arith.addf %117, %126 : vector<2x128xf32>
    %128 = arith.mulf %120, %120 : vector<2x128xf32>
    %129 = arith.addf %119, %128 : vector<2x128xf32>
    %130 = vector.extract_strided_slice %11 {offsets = [0, 1408], sizes = [2, 128], strides = [1, 1]} : vector<2x2048xf32> to vector<2x128xf32>
    %131 = vector.extract_strided_slice %14 {offsets = [0, 1408], sizes = [2, 128], strides = [1, 1]} : vector<2x2048xf32> to vector<2x128xf32>
    %132 = arith.addf %122, %130 : vector<2x128xf32>
    %133 = arith.addf %123, %131 : vector<2x128xf32>
    %134 = arith.mulf %130, %131 : vector<2x128xf32>
    %135 = arith.addf %125, %134 : vector<2x128xf32>
    %136 = arith.mulf %131, %131 : vector<2x128xf32>
    %137 = arith.addf %127, %136 : vector<2x128xf32>
    %138 = arith.mulf %130, %130 : vector<2x128xf32>
    %139 = arith.addf %129, %138 : vector<2x128xf32>
    %140 = vector.extract_strided_slice %11 {offsets = [0, 1536], sizes = [2, 128], strides = [1, 1]} : vector<2x2048xf32> to vector<2x128xf32>
    %141 = vector.extract_strided_slice %14 {offsets = [0, 1536], sizes = [2, 128], strides = [1, 1]} : vector<2x2048xf32> to vector<2x128xf32>
    %142 = arith.addf %132, %140 : vector<2x128xf32>
    %143 = arith.addf %133, %141 : vector<2x128xf32>
    %144 = arith.mulf %140, %141 : vector<2x128xf32>
    %145 = arith.addf %135, %144 : vector<2x128xf32>
    %146 = arith.mulf %141, %141 : vector<2x128xf32>
    %147 = arith.addf %137, %146 : vector<2x128xf32>
    %148 = arith.mulf %140, %140 : vector<2x128xf32>
    %149 = arith.addf %139, %148 : vector<2x128xf32>
    %150 = vector.extract_strided_slice %11 {offsets = [0, 1664], sizes = [2, 128], strides = [1, 1]} : vector<2x2048xf32> to vector<2x128xf32>
    %151 = vector.extract_strided_slice %14 {offsets = [0, 1664], sizes = [2, 128], strides = [1, 1]} : vector<2x2048xf32> to vector<2x128xf32>
    %152 = arith.addf %142, %150 : vector<2x128xf32>
    %153 = arith.addf %143, %151 : vector<2x128xf32>
    %154 = arith.mulf %150, %151 : vector<2x128xf32>
    %155 = arith.addf %145, %154 : vector<2x128xf32>
    %156 = arith.mulf %151, %151 : vector<2x128xf32>
    %157 = arith.addf %147, %156 : vector<2x128xf32>
    %158 = arith.mulf %150, %150 : vector<2x128xf32>
    %159 = arith.addf %149, %158 : vector<2x128xf32>
    %160 = vector.extract_strided_slice %11 {offsets = [0, 1792], sizes = [2, 128], strides = [1, 1]} : vector<2x2048xf32> to vector<2x128xf32>
    %161 = vector.extract_strided_slice %14 {offsets = [0, 1792], sizes = [2, 128], strides = [1, 1]} : vector<2x2048xf32> to vector<2x128xf32>
    %162 = arith.addf %152, %160 : vector<2x128xf32>
    %163 = arith.addf %153, %161 : vector<2x128xf32>
    %164 = arith.mulf %160, %161 : vector<2x128xf32>
    %165 = arith.addf %155, %164 : vector<2x128xf32>
    %166 = arith.mulf %161, %161 : vector<2x128xf32>
    %167 = arith.addf %157, %166 : vector<2x128xf32>
    %168 = arith.mulf %160, %160 : vector<2x128xf32>
    %169 = arith.addf %159, %168 : vector<2x128xf32>
    %170 = vector.extract_strided_slice %11 {offsets = [0, 1920], sizes = [2, 128], strides = [1, 1]} : vector<2x2048xf32> to vector<2x128xf32>
    %171 = vector.extract_strided_slice %14 {offsets = [0, 1920], sizes = [2, 128], strides = [1, 1]} : vector<2x2048xf32> to vector<2x128xf32>
    %172 = arith.addf %162, %170 : vector<2x128xf32>
    %173 = arith.addf %163, %171 : vector<2x128xf32>
    %174 = arith.mulf %170, %171 : vector<2x128xf32>
    %175 = arith.addf %165, %174 : vector<2x128xf32>
    %176 = arith.mulf %171, %171 : vector<2x128xf32>
    %177 = arith.addf %167, %176 : vector<2x128xf32>
    %178 = arith.mulf %170, %170 : vector<2x128xf32>
    %179 = arith.addf %169, %178 : vector<2x128xf32>
    %c0_10 = arith.constant 0 : index
    %c0_11 = arith.constant 0 : index
    %c0_12 = arith.constant 0 : index
    %180 = vector.load %arg5[%c0_10, %c0_11, %c0_12] : memref<5x2x128xf32, #tpu.memory_space<vmem>>, vector<1x2x128xf32>
    %181 = vector.shape_cast %180 : vector<1x2x128xf32> to vector<2x128xf32>
    %182 = arith.addf %181, %172 : vector<2x128xf32>
    %c0_13 = arith.constant 0 : index
    %c0_14 = arith.constant 0 : index
    %c0_15 = arith.constant 0 : index
    %183 = vector.load %arg5[%c0_13, %c0_14, %c0_15] : memref<5x2x128xf32, #tpu.memory_space<vmem>>, vector<1x2x128xf32>
    %184 = vector.shape_cast %183 : vector<1x2x128xf32> to vector<2x128xf32>
    %185 = vector.shape_cast %182 : vector<2x128xf32> to vector<1x2x128xf32>
    tpu.vector_store %arg5[%c0_13, %c0_14, %c0_15], %185 {strides = array<i32>} : memref<5x2x128xf32, #tpu.memory_space<vmem>>, vector<1x2x128xf32>,
    %c1 = arith.constant 1 : index
    %c0_16 = arith.constant 0 : index
    %c0_17 = arith.constant 0 : index
    %186 = vector.load %arg5[%c1, %c0_16, %c0_17] : memref<5x2x128xf32, #tpu.memory_space<vmem>>, vector<1x2x128xf32>
    %187 = vector.shape_cast %186 : vector<1x2x128xf32> to vector<2x128xf32>
    %188 = arith.addf %187, %173 : vector<2x128xf32>
    %c1_18 = arith.constant 1 : index
    %c0_19 = arith.constant 0 : index
    %c0_20 = arith.constant 0 : index
    %189 = vector.load %arg5[%c1_18, %c0_19, %c0_20] : memref<5x2x128xf32, #tpu.memory_space<vmem>>, vector<1x2x128xf32>
    %190 = vector.shape_cast %189 : vector<1x2x128xf32> to vector<2x128xf32>
    %191 = vector.shape_cast %188 : vector<2x128xf32> to vector<1x2x128xf32>
    tpu.vector_store %arg5[%c1_18, %c0_19, %c0_20], %191 {strides = array<i32>} : memref<5x2x128xf32, #tpu.memory_space<vmem>>, vector<1x2x128xf32>,
    %c2 = arith.constant 2 : index
    %c0_21 = arith.constant 0 : index
    %c0_22 = arith.constant 0 : index
    %192 = vector.load %arg5[%c2, %c0_21, %c0_22] : memref<5x2x128xf32, #tpu.memory_space<vmem>>, vector<1x2x128xf32>
    %193 = vector.shape_cast %192 : vector<1x2x128xf32> to vector<2x128xf32>
    %194 = arith.addf %193, %175 : vector<2x128xf32>
    %c2_23 = arith.constant 2 : index
    %c0_24 = arith.constant 0 : index
    %c0_25 = arith.constant 0 : index
    %195 = vector.load %arg5[%c2_23, %c0_24, %c0_25] : memref<5x2x128xf32, #tpu.memory_space<vmem>>, vector<1x2x128xf32>
    %196 = vector.shape_cast %195 : vector<1x2x128xf32> to vector<2x128xf32>
    %197 = vector.shape_cast %194 : vector<2x128xf32> to vector<1x2x128xf32>
    tpu.vector_store %arg5[%c2_23, %c0_24, %c0_25], %197 {strides = array<i32>} : memref<5x2x128xf32, #tpu.memory_space<vmem>>, vector<1x2x128xf32>,
    %c3 = arith.constant 3 : index
    %c0_26 = arith.constant 0 : index
    %c0_27 = arith.constant 0 : index
    %198 = vector.load %arg5[%c3, %c0_26, %c0_27] : memref<5x2x128xf32, #tpu.memory_space<vmem>>, vector<1x2x128xf32>
    %199 = vector.shape_cast %198 : vector<1x2x128xf32> to vector<2x128xf32>
    %200 = arith.addf %199, %177 : vector<2x128xf32>
    %c3_28 = arith.constant 3 : index
    %c0_29 = arith.constant 0 : index
    %c0_30 = arith.constant 0 : index
    %201 = vector.load %arg5[%c3_28, %c0_29, %c0_30] : memref<5x2x128xf32, #tpu.memory_space<vmem>>, vector<1x2x128xf32>
    %202 = vector.shape_cast %201 : vector<1x2x128xf32> to vector<2x128xf32>
    %203 = vector.shape_cast %200 : vector<2x128xf32> to vector<1x2x128xf32>
    tpu.vector_store %arg5[%c3_28, %c0_29, %c0_30], %203 {strides = array<i32>} : memref<5x2x128xf32, #tpu.memory_space<vmem>>, vector<1x2x128xf32>,
    %c4 = arith.constant 4 : index
    %c0_31 = arith.constant 0 : index
    %c0_32 = arith.constant 0 : index
    %204 = vector.load %arg5[%c4, %c0_31, %c0_32] : memref<5x2x128xf32, #tpu.memory_space<vmem>>, vector<1x2x128xf32>
    %205 = vector.shape_cast %204 : vector<1x2x128xf32> to vector<2x128xf32>
    %206 = arith.addf %205, %179 : vector<2x128xf32>
    %c4_33 = arith.constant 4 : index
    %c0_34 = arith.constant 0 : index
    %c0_35 = arith.constant 0 : index
    %207 = vector.load %arg5[%c4_33, %c0_34, %c0_35] : memref<5x2x128xf32, #tpu.memory_space<vmem>>, vector<1x2x128xf32>
    %208 = vector.shape_cast %207 : vector<1x2x128xf32> to vector<2x128xf32>
    %209 = vector.shape_cast %206 : vector<2x128xf32> to vector<1x2x128xf32>
    tpu.vector_store %arg5[%c4_33, %c0_34, %c0_35], %209 {strides = array<i32>} : memref<5x2x128xf32, #tpu.memory_space<vmem>>, vector<1x2x128xf32>,
    %c3_i32 = arith.constant 3 : i32
    %210 = arith.cmpi eq, %arg1, %c3_i32 : i32
    %211 = arith.extui %210 : i1 to i32
    %c0_i32_36 = arith.constant 0 : i32
    %212 = arith.cmpi ne, %211, %c0_i32_36 : i32
    scf.if %212 {
      %c0_37 = arith.constant 0 : index
      %c0_38 = arith.constant 0 : index
      %c0_39 = arith.constant 0 : index
      %213 = vector.load %arg5[%c0_37, %c0_38, %c0_39] : memref<5x2x128xf32, #tpu.memory_space<vmem>>, vector<1x2x128xf32>
      %214 = vector.shape_cast %213 : vector<1x2x128xf32> to vector<2x128xf32>
      %cst_40 = arith.constant dense<0.000000e+00> : vector<2xf32>
      %215 = vector.multi_reduction <add>, %214, %cst_40 [1] : vector<2x128xf32> to vector<2xf32>
      %216 = vector.shape_cast %215 : vector<2xf32> to vector<2x1xf32>
      %c1_41 = arith.constant 1 : index
      %c0_42 = arith.constant 0 : index
      %c0_43 = arith.constant 0 : index
      %217 = vector.load %arg5[%c1_41, %c0_42, %c0_43] : memref<5x2x128xf32, #tpu.memory_space<vmem>>, vector<1x2x128xf32>
      %218 = vector.shape_cast %217 : vector<1x2x128xf32> to vector<2x128xf32>
      %cst_44 = arith.constant dense<0.000000e+00> : vector<2xf32>
      %219 = vector.multi_reduction <add>, %218, %cst_44 [1] : vector<2x128xf32> to vector<2xf32>
      %220 = vector.shape_cast %219 : vector<2xf32> to vector<2x1xf32>
      %c2_45 = arith.constant 2 : index
      %c0_46 = arith.constant 0 : index
      %c0_47 = arith.constant 0 : index
      %221 = vector.load %arg5[%c2_45, %c0_46, %c0_47] : memref<5x2x128xf32, #tpu.memory_space<vmem>>, vector<1x2x128xf32>
      %222 = vector.shape_cast %221 : vector<1x2x128xf32> to vector<2x128xf32>
      %cst_48 = arith.constant dense<0.000000e+00> : vector<2xf32>
      %223 = vector.multi_reduction <add>, %222, %cst_48 [1] : vector<2x128xf32> to vector<2xf32>
      %224 = vector.shape_cast %223 : vector<2xf32> to vector<2x1xf32>
      %c3_49 = arith.constant 3 : index
      %c0_50 = arith.constant 0 : index
      %c0_51 = arith.constant 0 : index
      %225 = vector.load %arg5[%c3_49, %c0_50, %c0_51] : memref<5x2x128xf32, #tpu.memory_space<vmem>>, vector<1x2x128xf32>
      %226 = vector.shape_cast %225 : vector<1x2x128xf32> to vector<2x128xf32>
      %cst_52 = arith.constant dense<0.000000e+00> : vector<2xf32>
      %227 = vector.multi_reduction <add>, %226, %cst_52 [1] : vector<2x128xf32> to vector<2xf32>
      %228 = vector.shape_cast %227 : vector<2xf32> to vector<2x1xf32>
      %c4_53 = arith.constant 4 : index
      %c0_54 = arith.constant 0 : index
      %c0_55 = arith.constant 0 : index
      %229 = vector.load %arg5[%c4_53, %c0_54, %c0_55] : memref<5x2x128xf32, #tpu.memory_space<vmem>>, vector<1x2x128xf32>
      %230 = vector.shape_cast %229 : vector<1x2x128xf32> to vector<2x128xf32>
      %cst_56 = arith.constant dense<0.000000e+00> : vector<2xf32>
      %231 = vector.multi_reduction <add>, %230, %cst_56 [1] : vector<2x128xf32> to vector<2xf32>
      %232 = vector.shape_cast %231 : vector<2xf32> to vector<2x1xf32>
      %233 = arith.mulf %216, %220 : vector<2x1xf32>
      %cst_57 = arith.constant 1.22070313E-4 : f32
      %234 = vector.broadcast %cst_57 : f32 to vector<2x1xf32>
      %235 = arith.mulf %233, %234 : vector<2x1xf32>
      %236 = arith.subf %224, %235 : vector<2x1xf32>
      %237 = arith.mulf %220, %220 : vector<2x1xf32>
      %cst_58 = arith.constant 1.22070313E-4 : f32
      %238 = vector.broadcast %cst_58 : f32 to vector<2x1xf32>
      %239 = arith.mulf %237, %238 : vector<2x1xf32>
      %240 = arith.subf %228, %239 : vector<2x1xf32>
      %cst_59 = arith.constant 0.000000e+00 : f32
      %241 = vector.broadcast %cst_59 : f32 to vector<2x1xf32>
      %242 = arith.maximumf %240, %241 : vector<2x1xf32>
      %243 = arith.mulf %216, %216 : vector<2x1xf32>
      %cst_60 = arith.constant 1.22070313E-4 : f32
      %244 = vector.broadcast %cst_60 : f32 to vector<2x1xf32>
      %245 = arith.mulf %243, %244 : vector<2x1xf32>
      %246 = arith.subf %232, %245 : vector<2x1xf32>
      %cst_61 = arith.constant 0.000000e+00 : f32
      %247 = vector.broadcast %cst_61 : f32 to vector<2x1xf32>
      %248 = arith.maximumf %246, %247 : vector<2x1xf32>
      %cst_62 = arith.constant 1.1920929E-7 : f32
      %249 = vector.broadcast %cst_62 : f32 to vector<2x1xf32>
      %250 = arith.addf %236, %249 : vector<2x1xf32>
      %cst_63 = arith.constant 1.1920929E-7 : f32
      %251 = vector.broadcast %cst_63 : f32 to vector<2x1xf32>
      %252 = arith.addf %242, %251 : vector<2x1xf32>
      %253 = arith.divf %250, %252 : vector<2x1xf32>
      %254 = arith.mulf %253, %253 : vector<2x1xf32>
      %255 = arith.mulf %254, %242 : vector<2x1xf32>
      %cst_64 = arith.constant 2.000000e+00 : f32
      %256 = vector.broadcast %cst_64 : f32 to vector<2x1xf32>
      %257 = arith.mulf %256, %253 : vector<2x1xf32>
      %258 = arith.mulf %257, %236 : vector<2x1xf32>
      %259 = arith.subf %255, %258 : vector<2x1xf32>
      %260 = arith.addf %259, %248 : vector<2x1xf32>
      %cst_65 = arith.constant 0.000000e+00 : f32
      %261 = vector.broadcast %cst_65 : f32 to vector<2x1xf32>
      %262 = arith.maximumf %260, %261 : vector<2x1xf32>
      %cst_66 = arith.constant 1.1920929E-7 : f32
      %263 = vector.broadcast %cst_66 : f32 to vector<2x1xf32>
      %264 = arith.addf %255, %263 : vector<2x1xf32>
      %cst_67 = arith.constant 1.1920929E-7 : f32
      %265 = vector.broadcast %cst_67 : f32 to vector<2x1xf32>
      %266 = arith.addf %262, %265 : vector<2x1xf32>
      %267 = arith.divf %264, %266 : vector<2x1xf32>
      %268 = math.log %267 : vector<2x1xf32>
      %cst_68 = arith.constant 4.34294462 : f32
      %269 = vector.broadcast %cst_68 : f32 to vector<2x1xf32>
      %270 = arith.mulf %269, %268 : vector<2x1xf32>
      %271 = vector.shape_cast %270 : vector<2x1xf32> to vector<2x1xf32>
      %272 = vector.broadcast %271 : vector<2x1xf32> to vector<2x128xf32>
      %c0_69 = arith.constant 0 : index
      %c0_70 = arith.constant 0 : index
      %273 = vector.load %arg4[%c0_69, %c0_70] : memref<2x128xf32, #tpu.memory_space<vmem>>, vector<2x128xf32>
      tpu.vector_store %arg4[%c0_69, %c0_70], %272 {strides = array<i32>} : memref<2x128xf32, #tpu.memory_space<vmem>>, vector<2x128xf32>,
    } else {
    }
    return
  }
  func.func @transform_0(%arg0: i32, %arg1: i32) -> (i32, i32) {
    %c0_i32 = arith.constant 0 : i32
    return %arg0, %arg1 : i32, i32
  }
  func.func @transform_1(%arg0: i32, %arg1: i32) -> (i32, i32) {
    %c0_i32 = arith.constant 0 : i32
    return %arg0, %arg1 : i32, i32
  }
  func.func @transform_2(%arg0: i32, %arg1: i32) -> (i32, i32) {
    %c0_i32 = arith.constant 0 : i32
    %c0_i32_0 = arith.constant 0 : i32
    return %arg0, %c0_i32 : i32, i32
  }
}

</mosaic_0001>

<llo_original>
// kernel: tpu_custom_call.1
$region0: #{tpu_custom_call.1}
  #allocation0 [shape = 'u32[]', space=smem, size = 0x4, offset = 0x4, fixed_abs, tag = 'smem constant byte address 0x4 - core index']
  #allocation1 [shape = 'u32[72,128]{1,0:T(1,128)}', space=vmem, size = 0x9000, scoped, tag = 'internal scratch']
  #allocation2 [shape = 'f32[5,2,128]{2,1,0:T(2,128)}', space=vmem, size = 0x1400, scoped, tag = 'scratch operand']
  %s0 = inlined_call_operand.hbm [shape: f32[2,8192], index: 0, kind: input, shape index: {}]
  %s1 = inlined_call_operand.hbm [shape: f32[2,8192], index: 1, kind: input, shape index: {}]
  %s2 = inlined_call_operand.hbm [shape: f32[2,128], index: 2, kind: output, shape index: {}]
  %s3 = sld [smem:[#allocation0]]
  $region57: #{tpu_custom_call.1} parent=0
    _
  %s5 = ssub.s32 1, %s3
  %s6 = scalar_select 0, %s5, %s3
  $region1: #{tpu_custom_call.1} parent=0
    #allocation3 [shape = 'u8[32768]{0}', space=vmem, size = 0x8000, scoped, tag = 'input window, operand 0']
    #allocation4 [shape = 's32[2]{0}', space=sflag, size = 0x8, scoped, tag = 'scoped memory for tpu_custom_call.1']
    #allocation5 [shape = 's32[2]{0}', space=sflag, size = 0x8, scoped, tag = 'scoped memory for tpu_custom_call.1']
    #allocation6 [shape = 'u8[32768]{0}', space=vmem, size = 0x8000, scoped, tag = 'input window, operand 1']
    #allocation7 [shape = 's32[2]{0}', space=sflag, size = 0x8, scoped, tag = 'scoped memory for tpu_custom_call.1']
    #allocation8 [shape = 'u8[1024]{0}', space=vmem, size = 0x400, scoped, tag = 'output window, operand 0, single buffered']
    %7 = vsyncpa [#allocation4], 0
    %s8 = scalar_lea.sflag [#allocation4], 1
    %9 = vsyncpa %s8, 0
    %10 = vsyncpa [#allocation7], 0
    %s11 = scalar_lea.sflag [#allocation7], 1
    %12 = vsyncpa %s11, 0
    %13 = vsyncpa [#allocation5], 0
    loop: start=0, step=1, limit=6
    $region2: #{tpu_custom_call.1} parent=1 // loop_pre_header
      _
    $region3: #{tpu_custom_call.1} parent=1 // loop_header
      %s15 = sphi 0, %s19
      %p16 = scmp.ge.s32.totalorder %s15, 6
      %s22 = sphi 0, %s34
      %s23 = sphi 0, %s30
      %s24 = sphi 0, %s22
      %s25 = sphi 0, %s23
      %s26 = sphi 0, %s24
      %s27 = sphi 0, %s25
      %s39 = sphi 0, %s41
      %s42 = sphi 0, %s39
      %s43 = sphi 0, %s42
      %s59 = sphi 0, %s43
      %s67 = sphi 0, %s69
      %s70 = sphi 0, %s67
      %s71 = sphi 0, %s70
      %s87 = sphi 0, %s71
      %s93 = sphi 0, %s95
      %s96 = sphi 0, %s93
      %s97 = sphi 0, %s96
      %s113 = sphi 0, %s97
    $region4: #{tpu_custom_call.1} parent=1 // loop_header_branch
      %18 = sbr.rel (%p16) target = $region8
    $region5: #{tpu_custom_call.1} parent=1 // loop_body
      %s20 = ssub.s32 %s15, 1
      %s21 = ssub.s32 %s15, 2
      %s28 = sadd.s32 1, %s23
      %p29 = scmp.ge.s32.totalorder %s28, 4
      %s30 = scalar_select %p29, 0, %s28
      %s31 = sadd.s32 1, %s22
      %s32 = scalar_select %p29, %s31, %s22
      %p33 = scmp.ge.s32.totalorder %s32, 1
      %s34 = scalar_select %p33, 0, %s32
      %s35 = ssub.s32 %s22, %s34
      %s36 = ssub.s32 %s23, %s30
      %s37 = sor.u32 %s35, %s36
      %p38 = scmp.eq.s32.totalorder %s37, 0
      %s40 = sadd.s32 %s39, 1
      %s41 = scalar_select %p38, %s39, %s40
      %p44 = pneg %p38
      %p45 = scmp.eq.s32.totalorder %s15, 3
      %p46 = por %p44, %p45
      %p47 = scmp.ne.s32.totalorder %s39, %s42
      %p48 = scmp.eq.s32.totalorder %s15, 0
      %p49 = por %p47, %p48
      %p50 = scmp.ne.s32.totalorder %s39, %s42
      %p51 = scmp.eq.s32.totalorder %s20, 3
      %p52 = por %p50, %p51
      %p53 = scmp.ne.s32.totalorder %s42, %s43
      %p54 = scmp.eq.s32.totalorder %s20, 0
      %p55 = por %p53, %p54
      %p56 = scmp.ne.s32.totalorder %s42, %s43
      %p57 = scmp.eq.s32.totalorder %s21, 3
      %p58 = por %p56, %p57
      %p60 = scmp.ne.s32.totalorder %s43, %s59
      %p61 = scmp.eq.s32.totalorder %s21, 0
      %p62 = por %p60, %p61
      %s63 = ssub.s32 %s22, %s34
      %s64 = ssub.s32 %s23, %s30
      %s65 = sor.u32 %s63, %s64
      %p66 = scmp.eq.s32.totalorder %s65, 0
      %s68 = sadd.s32 %s67, 1
      %s69 = scalar_select %p66, %s67, %s68
      %p72 = pneg %p66
      %p73 = scmp.eq.s32.totalorder %s15, 3
      %p74 = por %p72, %p73
      %p75 = scmp.ne.s32.totalorder %s67, %s70
      %p76 = scmp.eq.s32.totalorder %s15, 0
      %p77 = por %p75, %p76
      %p78 = scmp.ne.s32.totalorder %s67, %s70
      %p79 = scmp.eq.s32.totalorder %s20, 3
      %p80 = por %p78, %p79
      %p81 = scmp.ne.s32.totalorder %s70, %s71
      %p82 = scmp.eq.s32.totalorder %s20, 0
      %p83 = por %p81, %p82
      %p84 = scmp.ne.s32.totalorder %s70, %s71
      %p85 = scmp.eq.s32.totalorder %s21, 3
      %p86 = por %p84, %p85
      %p88 = scmp.ne.s32.totalorder %s71, %s87
      %p89 = scmp.eq.s32.totalorder %s21, 0
      %p90 = por %p88, %p89
      %s91 = ssub.s32 %s22, %s34
      %p92 = scmp.eq.s32.totalorder %s91, 0
      %s94 = sadd.s32 %s93, 1
      %s95 = scalar_select %p92, %s93, %s94
      %p98 = pneg %p92
      %p99 = scmp.eq.s32.totalorder %s15, 3
      %p100 = por %p98, %p99
      %p101 = scmp.ne.s32.totalorder %s93, %s96
      %p102 = scmp.eq.s32.totalorder %s15, 0
      %p103 = por %p101, %p102
      %p104 = scmp.ne.s32.totalorder %s93, %s96
      %p105 = scmp.eq.s32.totalorder %s20, 3
      %p106 = por %p104, %p105
      %p107 = scmp.ne.s32.totalorder %s96, %s97
      %p108 = scmp.eq.s32.totalorder %s20, 0
      %p109 = por %p107, %p108
      %p110 = scmp.ne.s32.totalorder %s96, %s97
      %p111 = scmp.eq.s32.totalorder %s21, 3
      %p112 = por %p110, %p111
      %p114 = scmp.ne.s32.totalorder %s97, %s113
      %p115 = scmp.eq.s32.totalorder %s21, 0
      %p116 = por %p114, %p115
      %p117 = scmp.le.s32.totalorder 1, %s15
      %p118 = scmp.lt.s32.totalorder %s15, 5
      %p119 = pnand %p117, %p118
      %p120 = pneg %p119
      // Predicated region
      $region9: #{tpu_custom_call.1} parent=5 // pred_check
        _
      $region10: #{tpu_custom_call.1} parent=5 // pred_check_branch
        %122 = sbr.rel (%p119) target = $region12
      $region11: #{tpu_custom_call.1} parent=5 // pred_region
        %s123 = ssub.s32 %s15, 1
      $region12: #{tpu_custom_call.1} parent=5 // pred_fallthru
        _
      %p124 = scmp.lt.s32.totalorder %s15, 4
      // Predicated region
      $region13: #{tpu_custom_call.1} parent=5 // pred_check
        %p125 = pneg %p124
      $region14: #{tpu_custom_call.1} parent=5 // pred_check_branch
        %127 = sbr.rel (%p125) target = $region16
      $region15: #{tpu_custom_call.1} parent=5 // pred_region
        // Predicated region
        $region17: #{tpu_custom_call.1} parent=15 // pred_check
          %p128 = pneg %p49
        $region18: #{tpu_custom_call.1} parent=15 // pred_check_branch
          %130 = sbr.rel (%p128) target = $region20
        $region19: #{tpu_custom_call.1} parent=15 // pred_region
          %s131 = sand.u32 %s39, 1
          %s132 = scalar_lea.sflag [#allocation4], %s131
          %s133 = sand.u32 %s39, 1
          %s134 = smul.addr %s133, 32
          %s135 = scalar_lea.vmem [#allocation3], %s134
          %s136 = smul.u32 16, %s23
          %138 = vsyncadd %s132, 0
          %s139 = smul.addr %s22, 64
          %s140 = sadd.s32 %s136, %s139
          %s141 = smul.addr %s140, 2
          %s142 = scalar_lea.hbm %s0, %s141
          %s144 = sshll.u32 %s142, 4
          %s145 = int_to_ptr.hbm [resolvable:$true] %s144
          %s146 = sshll.u32 %s135, 4
          %s147 = int_to_ptr.vmem [resolvable:$true] %s146
          %149 = dma.hbm_to_vmem [thread:$0]  %s145, 512, %s147, %s132
        $region20: #{tpu_custom_call.1} parent=15 // pred_fallthru
          _
        // Predicated region
        $region21: #{tpu_custom_call.1} parent=15 // pred_check
          %p150 = pneg %p77
        $region22: #{tpu_custom_call.1} parent=15 // pred_check_branch
          %152 = sbr.rel (%p150) target = $region24
        $region23: #{tpu_custom_call.1} parent=15 // pred_region
          %s153 = sand.u32 %s67, 1
          %s154 = scalar_lea.sflag [#allocation7], %s153
          %s155 = sand.u32 %s67, 1
          %s156 = smul.addr %s155, 32
          %s157 = scalar_lea.vmem [#allocation6], %s156
          %s158 = smul.u32 16, %s23
          %160 = vsyncadd %s154, 0
          %s161 = smul.addr %s22, 64
          %s162 = sadd.s32 %s158, %s161
          %s163 = smul.addr %s162, 2
          %s164 = scalar_lea.hbm %s1, %s163
          %s166 = sshll.u32 %s164, 4
          %s167 = int_to_ptr.hbm [resolvable:$true] %s166
          %s168 = sshll.u32 %s157, 4
          %s169 = int_to_ptr.vmem [resolvable:$true] %s168
          %171 = dma.hbm_to_vmem [thread:$0]  %s167, 512, %s169, %s154
        $region24: #{tpu_custom_call.1} parent=15 // pred_fallthru
          _
      $region16: #{tpu_custom_call.1} parent=5 // pred_fallthru
        _
      %p172 = scmp.le.s32.totalorder 1, %s15
      %p173 = scmp.lt.s32.totalorder %s15, 5
      %p174 = pnand %p172, %p173
      %p175 = pneg %p174
      // Predicated region
      $region25: #{tpu_custom_call.1} parent=5 // pred_check
        _
      $region26: #{tpu_custom_call.1} parent=5 // pred_check_branch
        %177 = sbr.rel (%p174) target = $region28
      $region27: #{tpu_custom_call.1} parent=5 // pred_region
        %s178 = ssub.s32 %s15, 1
        %s179 = sand.u32 %s42, 1
        %s180 = scalar_lea.sflag [#allocation4], %s179
        %s181 = sand.u32 %s42, 1
        %s182 = smul.addr %s181, 32
        %s183 = scalar_lea.vmem [#allocation3], %s182
        // Predicated region
        $region29: #{tpu_custom_call.1} parent=27 // pred_check
          %p184 = pneg %p55
        $region30: #{tpu_custom_call.1} parent=27 // pred_check_branch
          %186 = sbr.rel (%p184) target = $region32
        $region31: #{tpu_custom_call.1} parent=27 // pred_region
          %188 = dma.done %s180, 512
        $region32: #{tpu_custom_call.1} parent=27 // pred_fallthru
          _
        %s189 = sand.u32 %s70, 1
        %s190 = scalar_lea.sflag [#allocation7], %s189
        %s191 = sand.u32 %s70, 1
        %s192 = smul.addr %s191, 32
        %s193 = scalar_lea.vmem [#allocation6], %s192
        // Predicated region
        $region33: #{tpu_custom_call.1} parent=27 // pred_check
          %p194 = pneg %p83
        $region34: #{tpu_custom_call.1} parent=27 // pred_check_branch
          %196 = sbr.rel (%p194) target = $region36
        $region35: #{tpu_custom_call.1} parent=27 // pred_region
          %198 = dma.done %s190, 512
        $region36: #{tpu_custom_call.1} parent=27 // pred_fallthru
          _
        %s199 = sand.u32 %s42, 1
        %s200 = scalar_lea.sflag [#allocation4], %s199
        %s201 = sand.u32 %s42, 1
        %s202 = smul.addr %s201, 32
        %s203 = scalar_lea.vmem [#allocation3], %s202
        %p204 = pneg %p55
        %p205 = pneg %p52
        %s206 = sand.u32 %s70, 1
        %s207 = scalar_lea.sflag [#allocation7], %s206
        %s208 = sand.u32 %s70, 1
        %s209 = smul.addr %s208, 32
        %s210 = scalar_lea.vmem [#allocation6], %s209
        %p211 = pneg %p83
        %p212 = pneg %p80
        %p213 = pneg %p109
        %p214 = pneg %p106
        %s215 = smul.u32 16, %s25
        %s216 = smul.u32 16, %s25
        %p217 = scmp.eq.s32.totalorder %s25, 0
        // Predicated region
        $region37: #{tpu_custom_call.1} parent=27 // pred_check
          %p218 = pneg %p217
        $region38: #{tpu_custom_call.1} parent=27 // pred_check_branch
          %220 = sbr.rel (%p218) target = $region40
        $region39: #{tpu_custom_call.1} parent=27 // pred_region
          %221 = vst [vmem:[#allocation2] sm:$0x3] 0.0
          %222 = vst [vmem:[#allocation2 + $0x2] sm:$0x3] 0.0
          %223 = vst [vmem:[#allocation2 + $0x4] sm:$0x3] 0.0
          %224 = vst [vmem:[#allocation2 + $0x6] sm:$0x3] 0.0
          %225 = vst [vmem:[#allocation2 + $0x8] sm:$0x3] 0.0
        $region40: #{tpu_custom_call.1} parent=27 // pred_fallthru
          _
        %s226 = smul.u32 %s25, 2048
        %v227 = vlaneseq
        %v228 = vand.u32 %v227, 127
        %v229 = vadd.s32 %v228, 128
        %v230 = vadd.s32 %v228, 256
        %v231 = vadd.s32 %v228, 384
        %v232 = vadd.s32 %v228, 512
        %v233 = vadd.s32 %v228, 640
        %v234 = vadd.s32 %v228, 768
        %v235 = vadd.s32 %v228, 896
        %v236 = vadd.s32 %v228, 1024
        %v237 = vadd.s32 %v228, 1152
        %v238 = vadd.s32 %v228, 1280
        %v239 = vadd.s32 %v228, 1408
        %v240 = vadd.s32 %v228, 1536
        %v241 = vadd.s32 %v228, 1664
        %v242 = vadd.s32 %v228, 1792
        %v243 = vadd.s32 %v228, 1920
        %v244 = vstv %s226
        %v245 = vadd.s32 %v244, %v228
        %v246 = vadd.s32 %v244, %v229
        %v247 = vadd.s32 %v244, %v230
        %v248 = vadd.s32 %v244, %v231
        %v249 = vadd.s32 %v244, %v232
        %v250 = vadd.s32 %v244, %v233
        %v251 = vadd.s32 %v244, %v234
        %v252 = vadd.s32 %v244, %v235
        %v253 = vadd.s32 %v244, %v236
        %v254 = vadd.s32 %v244, %v237
        %v255 = vadd.s32 %v244, %v238
        %v256 = vadd.s32 %v244, %v239
        %v257 = vadd.s32 %v244, %v240
        %v258 = vadd.s32 %v244, %v241
        %v259 = vadd.s32 %v244, %v242
        %v260 = vadd.s32 %v244, %v243
        %vm261 = vcmp.lt.s32.totalorder %v245, 8192
        %vm262 = vcmp.lt.s32.totalorder %v246, 8192
        %vm263 = vcmp.lt.s32.totalorder %v247, 8192
        %vm264 = vcmp.lt.s32.totalorder %v248, 8192
        %vm265 = vcmp.lt.s32.totalorder %v249, 8192
        %vm266 = vcmp.lt.s32.totalorder %v250, 8192
        %vm267 = vcmp.lt.s32.totalorder %v251, 8192
        %vm268 = vcmp.lt.s32.totalorder %v252, 8192
        %vm269 = vcmp.lt.s32.totalorder %v253, 8192
        %vm270 = vcmp.lt.s32.totalorder %v254, 8192
        %vm271 = vcmp.lt.s32.totalorder %v255, 8192
        %vm272 = vcmp.lt.s32.totalorder %v256, 8192
        %vm273 = vcmp.lt.s32.totalorder %v257, 8192
        %vm274 = vcmp.lt.s32.totalorder %v258, 8192
        %vm275 = vcmp.lt.s32.totalorder %v259, 8192
        %vm276 = vcmp.lt.s32.totalorder %v260, 8192
        %v277 = vld [vmem:[%s183] sm:$0xff]
        %v278 = vld [vmem:[%s183 + $0x8] sm:$0xff]
        %v279 = vld [vmem:[%s183 + $0x10] sm:$0xff]
        %v280 = vld [vmem:[%s183 + $0x18] sm:$0xff]
        %285 = vst [vmem:[#allocation1] ss:$4 sm:$0xff] %v277
        %s286 = scalar_lea.vmem [#allocation1], 32
        %287 = vst [vmem:[%s286] ss:$4 sm:$0xff] %v278
        %v288 = vld.sshfl [vmem:[#allocation1] sm:$0xff pattern:$0x73625140]
        %v289 = vld.sshfl [vmem:[#allocation1 + $0x8] sm:$0xff pattern:$0x73625140]
        %v290 = vld.sshfl [vmem:[#allocation1 + $0x10] sm:$0xff pattern:$0x73625140]
        %v291 = vld.sshfl [vmem:[#allocation1 + $0x18] sm:$0xff pattern:$0x73625140]
        %v292 = vld.sshfl [vmem:[#allocation1 + $0x20] sm:$0xff pattern:$0x73625140]
        %v293 = vld.sshfl [vmem:[#allocation1 + $0x28] sm:$0xff pattern:$0x73625140]
        %v294 = vld.sshfl [vmem:[#allocation1 + $0x30] sm:$0xff pattern:$0x73625140]
        %v295 = vld.sshfl [vmem:[#allocation1 + $0x38] sm:$0xff pattern:$0x73625140]
        %296 = vst [vmem:[#allocation1] ss:$4 sm:$0xff] %v279
        %297 = vst [vmem:[%s286] ss:$4 sm:$0xff] %v280
        %v298 = vld.sshfl [vmem:[#allocation1] sm:$0xff pattern:$0x73625140]
        %v299 = vld.sshfl [vmem:[#allocation1 + $0x8] sm:$0xff pattern:$0x73625140]
        %v300 = vld.sshfl [vmem:[#allocation1 + $0x10] sm:$0xff pattern:$0x73625140]
        %v301 = vld.sshfl [vmem:[#allocation1 + $0x18] sm:$0xff pattern:$0x73625140]
        %v302 = vld.sshfl [vmem:[#allocation1 + $0x20] sm:$0xff pattern:$0x73625140]
        %v303 = vld.sshfl [vmem:[#allocation1 + $0x28] sm:$0xff pattern:$0x73625140]
        %v304 = vld.sshfl [vmem:[#allocation1 + $0x30] sm:$0xff pattern:$0x73625140]
        %v305 = vld.sshfl [vmem:[#allocation1 + $0x38] sm:$0xff pattern:$0x73625140]
        %v322 = vsel %vm261, %v288, 0.0
        %v323 = vsel %vm262, %v289, 0.0
        %v324 = vsel %vm263, %v290, 0.0
        %v325 = vsel %vm264, %v291, 0.0
        %v326 = vsel %vm265, %v292, 0.0
        %v327 = vsel %vm266, %v293, 0.0
        %v328 = vsel %vm267, %v294, 0.0
        %v329 = vsel %vm268, %v295, 0.0
        %v330 = vsel %vm269, %v298, 0.0
        %v331 = vsel %vm270, %v299, 0.0
        %v332 = vsel %vm271, %v300, 0.0
        %v333 = vsel %vm272, %v301, 0.0
        %v334 = vsel %vm273, %v302, 0.0
        %v335 = vsel %vm274, %v303, 0.0
        %v336 = vsel %vm275, %v304, 0.0
        %v337 = vsel %vm276, %v305, 0.0
        %v338 = vld [vmem:[%s193] sm:$0xff]
        %v339 = vld [vmem:[%s193 + $0x8] sm:$0xff]
        %v340 = vld [vmem:[%s193 + $0x10] sm:$0xff]
        %v341 = vld [vmem:[%s193 + $0x18] sm:$0xff]
        %346 = vst [vmem:[#allocation1] ss:$4 sm:$0xff] %v338
        %s347 = scalar_lea.vmem [#allocation1], 32
        %348 = vst [vmem:[%s347] ss:$4 sm:$0xff] %v339
        %v349 = vld.sshfl [vmem:[#allocation1] sm:$0xff pattern:$0x73625140]
        %v350 = vld.sshfl [vmem:[#allocation1 + $0x8] sm:$0xff pattern:$0x73625140]
        %v351 = vld.sshfl [vmem:[#allocation1 + $0x10] sm:$0xff pattern:$0x73625140]
        %v352 = vld.sshfl [vmem:[#allocation1 + $0x18] sm:$0xff pattern:$0x73625140]
        %v353 = vld.sshfl [vmem:[#allocation1 + $0x20] sm:$0xff pattern:$0x73625140]
        %v354 = vld.sshfl [vmem:[#allocation1 + $0x28] sm:$0xff pattern:$0x73625140]
        %v355 = vld.sshfl [vmem:[#allocation1 + $0x30] sm:$0xff pattern:$0x73625140]
        %v356 = vld.sshfl [vmem:[#allocation1 + $0x38] sm:$0xff pattern:$0x73625140]
        %357 = vst [vmem:[#allocation1] ss:$4 sm:$0xff] %v340
        %358 = vst [vmem:[%s347] ss:$4 sm:$0xff] %v341
        %v359 = vld.sshfl [vmem:[#allocation1] sm:$0xff pattern:$0x73625140]
        %v360 = vld.sshfl [vmem:[#allocation1 + $0x8] sm:$0xff pattern:$0x73625140]
        %v361 = vld.sshfl [vmem:[#allocation1 + $0x10] sm:$0xff pattern:$0x73625140]
        %v362 = vld.sshfl [vmem:[#allocation1 + $0x18] sm:$0xff pattern:$0x73625140]
        %v363 = vld.sshfl [vmem:[#allocation1 + $0x20] sm:$0xff pattern:$0x73625140]
        %v364 = vld.sshfl [vmem:[#allocation1 + $0x28] sm:$0xff pattern:$0x73625140]
        %v365 = vld.sshfl [vmem:[#allocation1 + $0x30] sm:$0xff pattern:$0x73625140]
        %v366 = vld.sshfl [vmem:[#allocation1 + $0x38] sm:$0xff pattern:$0x73625140]
        %v383 = vsel %vm261, %v349, 0.0
        %v384 = vsel %vm262, %v350, 0.0
        %v385 = vsel %vm263, %v351, 0.0
        %v386 = vsel %vm264, %v352, 0.0
        %v387 = vsel %vm265, %v353, 0.0
        %v388 = vsel %vm266, %v354, 0.0
        %v389 = vsel %vm267, %v355, 0.0
        %v390 = vsel %vm268, %v356, 0.0
        %v391 = vsel %vm269, %v359, 0.0
        %v392 = vsel %vm270, %v360, 0.0
        %v393 = vsel %vm271, %v361, 0.0
        %v394 = vsel %vm272, %v362, 0.0
        %v395 = vsel %vm273, %v363, 0.0
        %v396 = vsel %vm274, %v364, 0.0
        %v397 = vsel %vm275, %v365, 0.0
        %v398 = vsel %vm276, %v366, 0.0
        %v399 = vadd.f32 %v322, 0.0
        %v400 = vadd.f32 %v383, 0.0
        %v401 = vmul.f32 %v322, %v383
        %v402 = vadd.f32 %v401, 0.0
        %v403 = vmul.f32 %v383, %v383
        %v404 = vadd.f32 %v403, 0.0
        %v405 = vmul.f32 %v322, %v322
        %v406 = vadd.f32 %v405, 0.0
        %v407 = vadd.f32 %v399, %v323
        %v408 = vadd.f32 %v400, %v384
        %v409 = vmul.f32 %v323, %v384
        %v410 = vadd.f32 %v402, %v409
        %v411 = vmul.f32 %v384, %v384
        %v412 = vadd.f32 %v404, %v411
        %v413 = vmul.f32 %v323, %v323
        %v414 = vadd.f32 %v406, %v413
        %v415 = vadd.f32 %v407, %v324
        %v416 = vadd.f32 %v408, %v385
        %v417 = vmul.f32 %v324, %v385
        %v418 = vadd.f32 %v410, %v417
        %v419 = vmul.f32 %v385, %v385
        %v420 = vadd.f32 %v412, %v419
        %v421 = vmul.f32 %v324, %v324
        %v422 = vadd.f32 %v414, %v421
        %v423 = vadd.f32 %v415, %v325
        %v424 = vadd.f32 %v416, %v386
        %v425 = vmul.f32 %v325, %v386
        %v426 = vadd.f32 %v418, %v425
        %v427 = vmul.f32 %v386, %v386
        %v428 = vadd.f32 %v420, %v427
        %v429 = vmul.f32 %v325, %v325
        %v430 = vadd.f32 %v422, %v429
        %v431 = vadd.f32 %v423, %v326
        %v432 = vadd.f32 %v424, %v387
        %v433 = vmul.f32 %v326, %v387
        %v434 = vadd.f32 %v426, %v433
        %v435 = vmul.f32 %v387, %v387
        %v436 = vadd.f32 %v428, %v435
        %v437 = vmul.f32 %v326, %v326
        %v438 = vadd.f32 %v430, %v437
        %v439 = vadd.f32 %v431, %v327
        %v440 = vadd.f32 %v432, %v388
        %v441 = vmul.f32 %v327, %v388
        %v442 = vadd.f32 %v434, %v441
        %v443 = vmul.f32 %v388, %v388
        %v444 = vadd.f32 %v436, %v443
        %v445 = vmul.f32 %v327, %v327
        %v446 = vadd.f32 %v438, %v445
        %v447 = vadd.f32 %v439, %v328
        %v448 = vadd.f32 %v440, %v389
        %v449 = vmul.f32 %v328, %v389
        %v450 = vadd.f32 %v442, %v449
        %v451 = vmul.f32 %v389, %v389
        %v452 = vadd.f32 %v444, %v451
        %v453 = vmul.f32 %v328, %v328
        %v454 = vadd.f32 %v446, %v453
        %v455 = vadd.f32 %v447, %v329
        %v456 = vadd.f32 %v448, %v390
        %v457 = vmul.f32 %v329, %v390
        %v458 = vadd.f32 %v450, %v457
        %v459 = vmul.f32 %v390, %v390
        %v460 = vadd.f32 %v452, %v459
        %v461 = vmul.f32 %v329, %v329
        %v462 = vadd.f32 %v454, %v461
        %v463 = vadd.f32 %v455, %v330
        %v464 = vadd.f32 %v456, %v391
        %v465 = vmul.f32 %v330, %v391
        %v466 = vadd.f32 %v458, %v465
        %v467 = vmul.f32 %v391, %v391
        %v468 = vadd.f32 %v460, %v467
        %v469 = vmul.f32 %v330, %v330
        %v470 = vadd.f32 %v462, %v469
        %v471 = vadd.f32 %v463, %v331
        %v472 = vadd.f32 %v464, %v392
        %v473 = vmul.f32 %v331, %v392
        %v474 = vadd.f32 %v466, %v473
        %v475 = vmul.f32 %v392, %v392
        %v476 = vadd.f32 %v468, %v475
        %v477 = vmul.f32 %v331, %v331
        %v478 = vadd.f32 %v470, %v477
        %v479 = vadd.f32 %v471, %v332
        %v480 = vadd.f32 %v472, %v393
        %v481 = vmul.f32 %v332, %v393
        %v482 = vadd.f32 %v474, %v481
        %v483 = vmul.f32 %v393, %v393
        %v484 = vadd.f32 %v476, %v483
        %v485 = vmul.f32 %v332, %v332
        %v486 = vadd.f32 %v478, %v485
        %v487 = vadd.f32 %v479, %v333
        %v488 = vadd.f32 %v480, %v394
        %v489 = vmul.f32 %v333, %v394
        %v490 = vadd.f32 %v482, %v489
        %v491 = vmul.f32 %v394, %v394
        %v492 = vadd.f32 %v484, %v491
        %v493 = vmul.f32 %v333, %v333
        %v494 = vadd.f32 %v486, %v493
        %v495 = vadd.f32 %v487, %v334
        %v496 = vadd.f32 %v488, %v395
        %v497 = vmul.f32 %v334, %v395
        %v498 = vadd.f32 %v490, %v497
        %v499 = vmul.f32 %v395, %v395
        %v500 = vadd.f32 %v492, %v499
        %v501 = vmul.f32 %v334, %v334
        %v502 = vadd.f32 %v494, %v501
        %v503 = vadd.f32 %v495, %v335
        %v504 = vadd.f32 %v496, %v396
        %v505 = vmul.f32 %v335, %v396
        %v506 = vadd.f32 %v498, %v505
        %v507 = vmul.f32 %v396, %v396
        %v508 = vadd.f32 %v500, %v507
        %v509 = vmul.f32 %v335, %v335
        %v510 = vadd.f32 %v502, %v509
        %v511 = vadd.f32 %v503, %v336
        %v512 = vadd.f32 %v504, %v397
        %v513 = vmul.f32 %v336, %v397
        %v514 = vadd.f32 %v506, %v513
        %v515 = vmul.f32 %v397, %v397
        %v516 = vadd.f32 %v508, %v515
        %v517 = vmul.f32 %v336, %v336
        %v518 = vadd.f32 %v510, %v517
        %v519 = vadd.f32 %v511, %v337
        %v520 = vadd.f32 %v512, %v398
        %v521 = vmul.f32 %v337, %v398
        %v522 = vadd.f32 %v514, %v521
        %v523 = vmul.f32 %v398, %v398
        %v524 = vadd.f32 %v516, %v523
        %v525 = vmul.f32 %v337, %v337
        %v526 = vadd.f32 %v518, %v525
        %v527 = vld [vmem:[#allocation2] sm:$0x3]
        %v528 = vadd.f32 %v527, %v519
        %529 = vst [vmem:[#allocation2] sm:$0x3] %v528
        %s530 = scalar_lea.vmem [#allocation2], 2
        %v531 = vld [vmem:[%s530] sm:$0x3]
        %v532 = vadd.f32 %v531, %v520
        %533 = vst [vmem:[%s530] sm:$0x3] %v532
        %s534 = scalar_lea.vmem [#allocation2], 4
        %v535 = vld [vmem:[%s534] sm:$0x3]
        %v536 = vadd.f32 %v535, %v522
        %537 = vst [vmem:[%s534] sm:$0x3] %v536
        %s538 = scalar_lea.vmem [#allocation2], 6
        %v539 = vld [vmem:[%s538] sm:$0x3]
        %v540 = vadd.f32 %v539, %v524
        %541 = vst [vmem:[%s538] sm:$0x3] %v540
        %s542 = scalar_lea.vmem [#allocation2], 8
        %v543 = vld [vmem:[%s542] sm:$0x3]
        %v544 = vadd.f32 %v543, %v526
        %545 = vst [vmem:[%s542] sm:$0x3] %v544
        %p546 = scmp.eq.s32.totalorder %s25, 3
        // Predicated region
        $region41: #{tpu_custom_call.1} parent=27 // pred_check
          %p547 = pneg %p546
        $region42: #{tpu_custom_call.1} parent=27 // pred_check_branch
          %549 = sbr.rel (%p547) target = $region44
        $region43: #{tpu_custom_call.1} parent=27 // pred_region
          %v550 = vld [vmem:[#allocation2] sm:$0x3]
          %vm551 = vcmask 1041408
          %v552 = vsel %vm551, %v550, 0.0
          %553 = vadd.xlane.f32.xlu0 %v552
          %v554 = vpop.xlane.xlu0 %553
          %v555 = vld [vmem:[%s530] sm:$0x3]
          %v556 = vsel %vm551, %v555, 0.0
          %557 = vadd.xlane.f32.xlu0 %v556
          %v558 = vpop.xlane.xlu0 %557
          %v559 = vld [vmem:[%s534] sm:$0x3]
          %v560 = vsel %vm551, %v559, 0.0
          %561 = vadd.xlane.f32.xlu0 %v560
          %v562 = vpop.xlane.xlu0 %561
          %v563 = vld [vmem:[%s538] sm:$0x3]
          %v564 = vsel %vm551, %v563, 0.0
          %565 = vadd.xlane.f32.xlu0 %v564
          %v566 = vpop.xlane.xlu0 %565
          %v567 = vld [vmem:[%s542] sm:$0x3]
          %v568 = vsel %vm551, %v567, 0.0
          %569 = vadd.xlane.f32.xlu0 %v568
          %v570 = vpop.xlane.xlu0 %569
          %v571 = vmul.f32 %v554, %v558
          %v572 = vmul.f32 %v571, 0.00012207031
          %v573 = vsub.f32 %v562, %v572
          %v574 = vmul.f32 %v558, %v558
          %v575 = vmul.f32 %v574, 0.00012207031
          %v576 = vsub.f32 %v566, %v575
          %v577 = vmax.f32 %v576, 0.0
          %v578 = vmul.f32 %v554, %v554
          %v579 = vmul.f32 %v578, 0.00012207031
          %v580 = vsub.f32 %v570, %v579
          %v581 = vmax.f32 %v580, 0.0
          %v582 = vadd.f32 %v573, 1.1920929e-07
          %v583 = vadd.f32 %v577, 1.1920929e-07
          %v584 = vrcp.pop %v583
          %v585 = vmul.f32 %v583, %v584
          %v586 = vsub.f32 1.0, %v585
          %v587 = vmul.f32 %v584, %v586
          %v588 = vadd.f32 %v584, %v587
          %vm589 = vweird.f32 %v583
          %vm590 = vweird.f32 %v584
          %vm591 = vmor %vm589, %vm590
          %v592 = vsel %vm591, %v584, %v588
          %v593 = vand.u32 2147483647, %v583
          %vm594 = vcmp.eq.f32.partialorder %v593, 8.507059e+37
          %v595 = vand.u32 %v583, 2147483648
          %v596 = vor.u32 1.1754944e-38, %v595
          %v597 = vsel %vm594, %v596, %v592
          %v598 = vmul.f32 %v582, %v597
          %v599 = vmul.f32 %v598, %v598
          %v600 = vmul.f32 %v599, %v577
          %v601 = vmul.f32 %v598, 2.0
          %v602 = vmul.f32 %v601, %v573
          %v603 = vsub.f32 %v600, %v602
          %v604 = vadd.f32 %v603, %v581
          %v605 = vmax.f32 %v604, 0.0
          %v606 = vadd.f32 %v600, 1.1920929e-07
          %v607 = vadd.f32 %v605, 1.1920929e-07
          %v608 = vrcp.pop %v607
          %v609 = vmul.f32 %v607, %v608
          %v610 = vsub.f32 1.0, %v609
          %v611 = vmul.f32 %v608, %v610
          %v612 = vadd.f32 %v608, %v611
          %vm613 = vweird.f32 %v607
          %vm614 = vweird.f32 %v608
          %vm615 = vmor %vm613, %vm614
          %v616 = vsel %vm615, %v608, %v612
          %v617 = vand.u32 2147483647, %v607
          %vm618 = vcmp.eq.f32.partialorder %v617, 8.507059e+37
          %v619 = vand.u32 %v607, 2147483648
          %v620 = vor.u32 1.1754944e-38, %v619
          %v621 = vsel %vm618, %v620, %v616
          %v622 = vmul.f32 %v606, %v621
          %v623 = vlog2.pop %v622
          %v624 = vmul.f32 %v623, 0.6931472
          %v625 = vmul.f32 %v624, 4.3429446
          %626 = vst [vmem:[#allocation8] sm:$0x3] %v625
        $region44: #{tpu_custom_call.1} parent=27 // pred_fallthru
          _
        // Predicated region
        $region45: #{tpu_custom_call.1} parent=27 // pred_check
          %p627 = pneg %p106
        $region46: #{tpu_custom_call.1} parent=27 // pred_check_branch
          %629 = sbr.rel (%p627) target = $region48
        $region47: #{tpu_custom_call.1} parent=27 // pred_region
          %631 = vsyncadd [#allocation5], 0
          %s632 = smul.addr %s24, 2
          %s633 = scalar_lea.hbm %s2, %s632
          %s635 = sshll.u32 [#allocation8], 4
          %s636 = int_to_ptr.vmem [resolvable:$true] %s635
          %s637 = sshll.u32 %s633, 4
          %s638 = int_to_ptr.hbm [resolvable:$true] %s637
          %640 = dma.vmem_to_hbm [thread:$0]  %s636, 32, %s638, [#allocation5]
        $region48: #{tpu_custom_call.1} parent=27 // pred_fallthru
          _
        // Predicated region
        $region49: #{tpu_custom_call.1} parent=27 // pred_check
          %p641 = pneg %p106
        $region50: #{tpu_custom_call.1} parent=27 // pred_check_branch
          %643 = sbr.rel (%p641) target = $region52
        $region51: #{tpu_custom_call.1} parent=27 // pred_region
          %645 = dma.done [#allocation5], 32
        $region52: #{tpu_custom_call.1} parent=27 // pred_fallthru
          _
      $region28: #{tpu_custom_call.1} parent=5 // pred_fallthru
        _
      %p646 = scmp.le.s32.totalorder 2, %s15
      // Predicated region
      $region53: #{tpu_custom_call.1} parent=5 // pred_check
        %p647 = pneg %p646
      $region54: #{tpu_custom_call.1} parent=5 // pred_check_branch
        %649 = sbr.rel (%p647) target = $region56
      $region55: #{tpu_custom_call.1} parent=5 // pred_region
        %s650 = ssub.s32 %s15, 2
      $region56: #{tpu_custom_call.1} parent=5 // pred_fallthru
        _
    $region6: #{tpu_custom_call.1} parent=1 // loop_footer
      %s19 = sadd.s32 1, %s15
    $region7: #{tpu_custom_call.1} parent=1 // loop_footer_branch
      %14 = sbr.rel target = $region3
    $region8: #{tpu_custom_call.1} parent=1 // loop_exit
      _
    %651 = vsyncpa [#allocation4], 1
    %s652 = scalar_lea.sflag [#allocation4], 1
    %653 = vsyncpa %s652, 1
    %654 = vsyncpa [#allocation7], 1
    %s655 = scalar_lea.sflag [#allocation7], 1
    %656 = vsyncpa %s655, 1
    %657 = vsyncpa [#allocation5], 1
    %s658 = scalar_lea.sflag [#allocation5], 1
    %659 = vsyncpa %s658, 1

</llo_original>
